<compile_context>
chip_gen: v7x
topology: tpu7x:2x2x1
jax: 0.10.0
libtpu: 0.0.40
codegen_flags: <defaults>
</compile_context>

<pallas_src>
import jax
import jax.numpy as jnp
from jax.experimental import pallas as pl
from jax.experimental.pallas import tpu as pltpu


IN_FEATURES = 32
OUT_FEATURES = 10
DEFAULT_BLOCK_B = 1024  # batch-tile rows (multiple of 8; small vs VMEM limits)


def _round_up(n, m):
    return ((n + m - 1) // m) * m


def _task_specific_kernel(x_ref, w_ref, b_ref, o_ref):
    # x_ref: (TB, 32)  w_ref: (32, 10)  b_ref: (1, 10)  o_ref: (TB, 10)
    x = x_ref[...].astype(jnp.float32)
    w = w_ref[...].astype(jnp.float32)
    b = b_ref[...].astype(jnp.float32)

    # Linear: x @ W + b   (MXU matmul, f32 accumulate)
    logits = jnp.dot(x, w, preferred_element_type=jnp.float32) + b

    # log_softmax over dim=1 (feature axis), numerically stable.
    m = jnp.max(logits, axis=1, keepdims=True)
    shifted = logits - m
    lse = jnp.log(jnp.sum(jnp.exp(shifted), axis=1, keepdims=True))
    o_ref[...] = (shifted - lse).astype(o_ref.dtype)


def multi_tn_task_specific(x, w, b, *, block_b=DEFAULT_BLOCK_B):
    """Forward pass of MultiTNTaskSpecific.

    x: (B, 32) float32
    w: (32, 10) float32   (transposed relative to torch's (10, 32) layout)
    b: (10,)    float32
    returns: (B, 10) float32 == F.log_softmax(x @ w + b, dim=1)
    """
    B = x.shape[0]

    # Batch tile: multiple of 8 (sublane), capped at block_b.
    tb = min(block_b, _round_up(B, 8))
    padded_b = _round_up(B, tb)
    if padded_b != B:
        x = jnp.pad(x, ((0, padded_b - B), (0, 0)))

    b2d = b.reshape(1, OUT_FEATURES)
    grid = (padded_b // tb,)

    cost = pl.CostEstimate(
        flops=2 * padded_b * IN_FEATURES * OUT_FEATURES,
        transcendentals=padded_b * OUT_FEATURES,
        bytes_accessed=(
            padded_b * IN_FEATURES * 4          # x
            + IN_FEATURES * OUT_FEATURES * 4    # w
            + OUT_FEATURES * 4                  # b
            + padded_b * OUT_FEATURES * 4       # out
        ),
    )

    out = pl.pallas_call(
        _task_specific_kernel,
        out_shape=jax.ShapeDtypeStruct((padded_b, OUT_FEATURES), jnp.float32),
        grid=grid,
        in_specs=[
            # x: tiled along batch.
            pl.BlockSpec((tb, IN_FEATURES), lambda i: (i, 0)),
            # w, b: constant block index -> fetched once, stay resident.
            pl.BlockSpec((IN_FEATURES, OUT_FEATURES), lambda i: (0, 0)),
            pl.BlockSpec((1, OUT_FEATURES), lambda i: (0, 0)),
        ],
        out_specs=pl.BlockSpec((tb, OUT_FEATURES), lambda i: (i, 0)),
        compiler_params=pltpu.CompilerParams(
            dimension_semantics=("parallel",)
        ),
        cost_estimate=cost,
    )(x, w, b2d)

    if padded_b != B:
        out = out[:B]
    return out


def _reference(x, w, b):
    logits = x @ w + b[None, :]
    m = jnp.max(logits, axis=1, keepdims=True)
    shifted = logits - m
    return shifted - jnp.log(jnp.sum(jnp.exp(shifted), axis=1, keepdims=True))


if __name__ == "__main__":
    key = jax.random.PRNGKey(0)
    k_x, k_w, k_b, k_x2 = jax.random.split(key, 4)

    # Deterministic parameter init (mimics torch's Linear uniform init bounds).
    bound = 1.0 / (IN_FEATURES ** 0.5)
    w = jax.random.uniform(
        k_w, (IN_FEATURES, OUT_FEATURES), minval=-bound, maxval=bound,
        dtype=jnp.float32)
    b = jax.random.uniform(
        k_b, (OUT_FEATURES,), minval=-bound, maxval=bound, dtype=jnp.float32)

    # Case 1: batch that is a multiple of the sublane size (no padding path).
    batch = 8
    x = jax.random.normal(k_x, (batch, IN_FEATURES), dtype=jnp.float32)
    out = jax.block_until_ready(multi_tn_task_specific(x, w, b))
    ref = _reference(x, w, b)
    assert out.shape == (batch, OUT_FEATURES)
    assert jnp.allclose(out, ref, atol=1e-5, rtol=1e-5), "mismatch (B=8)"

    # Case 2: ragged batch exercising the padding path.
    batch2 = 6
    x2 = jax.random.normal(k_x2, (batch2, IN_FEATURES), dtype=jnp.float32)
    out2 = jax.block_until_ready(multi_tn_task_specific(x2, w, b))
    ref2 = _reference(x2, w, b)
    assert out2.shape == (batch2, OUT_FEATURES)
    assert jnp.allclose(out2, ref2, atol=1e-5, rtol=1e-5), "mismatch (B=6)"

    print("KERNEL_OK")
</pallas_src>

<mosaic_0001>
module attributes {stable_mosaic.version = 11 : i64} {
  func.func @_task_specific_kernel(%arg0: i32, %arg1: memref<8x32xf32, #tpu.memory_space<vmem>>, %arg2: memref<32x10xf32, #tpu.memory_space<vmem>>, %arg3: memref<1x10xf32, #tpu.memory_space<vmem>>, %arg4: memref<8x10xf32, #tpu.memory_space<vmem>>) attributes {dimension_semantics = [#tpu.dimension_semantics<parallel>], iteration_bounds = array<i64: 1>, scalar_prefetch = 0 : i64, scratch_operands = 0 : i64, tpu.core_type = #tpu.core_type<tc>, window_params = [{transform_indices = @transform_0, window_bounds = array<i64: 8, 32>}, {pipeline_mode = #tpu.pipeline_mode<synchronous>, transform_indices = @transform_1, window_bounds = array<i64: 32, 10>}, {pipeline_mode = #tpu.pipeline_mode<synchronous>, transform_indices = @transform_2, window_bounds = array<i64: 1, 10>}, {transform_indices = @transform_3, window_bounds = array<i64: 8, 10>}]} {
    %c0 = arith.constant 0 : index
    %c0_0 = arith.constant 0 : index
    %0 = vector.load %arg1[%c0, %c0_0] : memref<8x32xf32, #tpu.memory_space<vmem>>, vector<8x32xf32>
    %c0_1 = arith.constant 0 : index
    %c0_2 = arith.constant 0 : index
    %1 = vector.load %arg2[%c0_1, %c0_2] : memref<32x10xf32, #tpu.memory_space<vmem>>, vector<32x10xf32>
    %c0_3 = arith.constant 0 : index
    %c0_4 = arith.constant 0 : index
    %2 = vector.load %arg3[%c0_3, %c0_4] : memref<1x10xf32, #tpu.memory_space<vmem>>, vector<1x10xf32>
    %cst = arith.constant dense<0.000000e+00> : vector<8x10xf32>
    %3 = tpu.matmul %0, %1, %cst {dimension_numbers = #tpu.dot_dimension_numbers<[1], [0], [0], [1], [0, 0, 1, 1], [], []>} : vector<8x32xf32>, vector<32x10xf32>, vector<8x10xf32> -> vector<8x10xf32>
    %4 = vector.broadcast %2 : vector<1x10xf32> to vector<8x10xf32>
    %5 = arith.addf %3, %4 : vector<8x10xf32>
    %cst_5 = arith.constant dense<0xFF800000> : vector<8xf32>
    %6 = vector.multi_reduction <maximumf>, %5, %cst_5 [1] : vector<8x10xf32> to vector<8xf32>
    %7 = vector.shape_cast %6 : vector<8xf32> to vector<8x1xf32>
    %8 = vector.broadcast %7 : vector<8x1xf32> to vector<8x10xf32>
    %9 = arith.subf %5, %8 : vector<8x10xf32>
    %10 = math.exp %9 : vector<8x10xf32>
    %cst_6 = arith.constant dense<0.000000e+00> : vector<8xf32>
    %11 = vector.multi_reduction <add>, %10, %cst_6 [1] : vector<8x10xf32> to vector<8xf32>
    %12 = vector.shape_cast %11 : vector<8xf32> to vector<8x1xf32>
    %13 = math.log %12 : vector<8x1xf32>
    %14 = vector.broadcast %13 : vector<8x1xf32> to vector<8x10xf32>
    %15 = arith.subf %9, %14 : vector<8x10xf32>
    %c0_7 = arith.constant 0 : index
    %c0_8 = arith.constant 0 : index
    %16 = vector.load %arg4[%c0_7, %c0_8] : memref<8x10xf32, #tpu.memory_space<vmem>>, vector<8x10xf32>
    tpu.vector_store %arg4[%c0_7, %c0_8], %15 {strides = array<i32>} : memref<8x10xf32, #tpu.memory_space<vmem>>, vector<8x10xf32>,
    return
  }
  func.func @transform_0(%arg0: i32) -> (i32, i32) {
    %c0_i32 = arith.constant 0 : i32
    %c0_i32_0 = arith.constant 0 : i32
    return %arg0, %c0_i32 : i32, i32
  }
  func.func @transform_1(%arg0: i32) -> (i32, i32) {
    %c0_i32 = arith.constant 0 : i32
    %c0_i32_0 = arith.constant 0 : i32
    %c0_i32_1 = arith.constant 0 : i32
    return %c0_i32, %c0_i32_0 : i32, i32
  }
  func.func @transform_2(%arg0: i32) -> (i32, i32) {
    %c0_i32 = arith.constant 0 : i32
    %c0_i32_0 = arith.constant 0 : i32
    %c0_i32_1 = arith.constant 0 : i32
    return %c0_i32, %c0_i32_0 : i32, i32
  }
  func.func @transform_3(%arg0: i32) -> (i32, i32) {
    %c0_i32 = arith.constant 0 : i32
    %c0_i32_0 = arith.constant 0 : i32
    return %arg0, %c0_i32 : i32, i32
  }
}

</mosaic_0001>

<llo_original>
// kernel: tpu_custom_call.1
$region0: #{tpu_custom_call.1}
  #allocation0 [shape = 'u32[]', space=smem, size = 0x4, offset = 0x4, fixed_abs, tag = 'smem constant byte address 0x4 - core index']
  #allocation1 [shape = 'u32[144,128]{1,0:T(1,128)}', space=vmem, size = 0x12000, scoped, tag = 'internal scratch']
  %s0 = inlined_call_operand.vmem [shape: f32[8,32], index: 0, kind: input, shape index: {}]
  %s1 = inlined_call_operand.vmem [shape: f32[32,10], index: 1, kind: input, shape index: {}]
  %s2 = inlined_call_operand.vmem [shape: f32[1,10], index: 2, kind: input, shape index: {}]
  %s3 = inlined_call_operand.hbm [shape: f32[8,10], index: 3, kind: output, shape index: {}]
  %s4 = sld [smem:[#allocation0]]
  $region22: #{tpu_custom_call.1} parent=0
    _
  %s6 = ssub.s32 1, %s4
  %s7 = scalar_select 0, %s6, %s4
  $region1: #{tpu_custom_call.1} parent=0
    #allocation2 [shape = 'u8[4096]{0}', space=vmem, size = 0x1000, scoped, tag = 'output window, operand 0, single buffered']
    #allocation3 [shape = 's32[1]{0}', space=sflag, size = 0x4, scoped, tag = 'scoped memory for tpu_custom_call.1']
    %8 = vsyncpa [#allocation3], 0
    // Predicated region
    $region2: #{tpu_custom_call.1} parent=1 // pred_check
      _
    $region3: #{tpu_custom_call.1} parent=1 // pred_check_branch
      %10 = sbr.rel (0) target = $region5
    $region4: #{tpu_custom_call.1} parent=1 // pred_region
      _
    $region5: #{tpu_custom_call.1} parent=1 // pred_fallthru
      _
    // Predicated region
    $region6: #{tpu_custom_call.1} parent=1 // pred_check
      _
    $region7: #{tpu_custom_call.1} parent=1 // pred_check_branch
      %12 = sbr.rel (0) target = $region9
    $region8: #{tpu_custom_call.1} parent=1 // pred_region
      _
    $region9: #{tpu_custom_call.1} parent=1 // pred_fallthru
      _
    // Predicated region
    $region10: #{tpu_custom_call.1} parent=1 // pred_check
      _
    $region11: #{tpu_custom_call.1} parent=1 // pred_check_branch
      %14 = sbr.rel (0) target = $region13
    $region12: #{tpu_custom_call.1} parent=1 // pred_region
      _
    $region13: #{tpu_custom_call.1} parent=1 // pred_fallthru
      _
    %v15 = vld [vmem:[%s0] sm:$0xff]
    %v16 = vld [vmem:[%s1] sm:$0xff]
    %v17 = vld [vmem:[%s1 + $0x8] sm:$0xff]
    %v18 = vld [vmem:[%s1 + $0x10] sm:$0xff]
    %v19 = vld [vmem:[%s1 + $0x18] sm:$0xff]
    %v20 = vld [vmem:[%s2] sm:$0x1]
    %v22 = vlaneseq
    %v23 = vshrl.u32 %v22, 7
    %v24 = vsub.s32 0, %v23
    %v25 = vrot.slane %v20, %v24
    %vm27 = vcmask 261120
    %v29 = vsel %vm27, %v15, 0
    %31 = vmatprep.subr.mxu0 0.0
    %32 = vmatpush1.msra.mxu0 %v16
    %33 = vmatprep.subr.mxu0 0.0
    %34 = vmatpush1.msra.mxu0 %v17
    %35 = vmatprep.subr.mxu0 0.0
    %36 = vmatpush1.msra.mxu0 %v18
    %37 = vmatprep.subr.mxu0 0.0
    %38 = vmatpush1.msra.mxu0 %v19
    %39 = vmatprep.subr.mxu0 0.0
    %40 = vmatpush1.msra.mxu0 0.0
    %41 = vmatprep.subr.mxu0 0.0
    %42 = vmatpush1.msra.mxu0 0.0
    %43 = vmatprep.subr.mxu0 0.0
    %44 = vmatpush1.msra.mxu0 0.0
    %45 = vmatprep.subr.mxu0 0.0
    %46 = vmatpush1.msra.mxu0 0.0
    %47 = vmatprep.subr.mxu0 0.0
    %48 = vmatpush1.msra.mxu0 0.0
    %49 = vmatprep.subr.mxu0 0.0
    %50 = vmatpush1.msra.mxu0 0.0
    %51 = vmatprep.subr.mxu0 0.0
    %52 = vmatpush1.msra.mxu0 0.0
    %53 = vmatprep.subr.mxu0 0.0
    %54 = vmatpush1.msra.mxu0 0.0
    %55 = vmatprep.subr.mxu0 0.0
    %56 = vmatpush1.msra.mxu0 0.0
    %57 = vmatprep.subr.mxu0 0.0
    %58 = vmatpush1.msra.mxu0 0.0
    %59 = vmatprep.subr.mxu0 0.0
    %60 = vmatpush1.msra.mxu0 0.0
    %61 = vmatprep.subr.mxu0 0.0
    %62 = vmatpush1.msra.mxu0 0.0
    %63 = vmatprep.subr.mxu0 0.0
    %64 = vmatpush1.msra.mxu0 0.0
    %65 = vmatprep.subr.mxu0 0.0
    %66 = vmatpush1.msra.mxu0 0.0
    %67 = vmatprep.subr.mxu0 0.0
    %68 = vmatpush1.msra.mxu0 0.0
    %69 = vmatprep.subr.mxu0 0.0
    %70 = vmatpush1.msra.mxu0 0.0
    %71 = vmatprep.subr.mxu0 0.0
    %72 = vmatpush1.msra.mxu0 0.0
    %73 = vmatprep.subr.mxu0 0.0
    %74 = vmatpush1.msra.mxu0 0.0
    %75 = vmatprep.subr.mxu0 0.0
    %76 = vmatpush1.msra.mxu0 0.0
    %77 = vmatprep.subr.mxu0 0.0
    %78 = vmatpush1.msra.mxu0 0.0
    %79 = vmatprep.subr.mxu0 0.0
    %80 = vmatpush1.msra.mxu0 0.0
    %81 = vmatprep.subr.mxu0 0.0
    %82 = vmatpush1.msra.mxu0 0.0
    %83 = vmatprep.subr.mxu0 0.0
    %84 = vmatpush1.msra.mxu0 0.0
    %85 = vmatprep.subr.mxu0 0.0
    %86 = vmatpush1.msra.mxu0 0.0
    %87 = vmatprep.subr.mxu0 0.0
    %88 = vmatpush1.msra.mxu0 0.0
    %89 = vmatprep.subr.mxu0 0.0
    %90 = vmatpush1.msra.mxu0 0.0
    %91 = vmatprep.subr.mxu0 0.0
    %92 = vmatpush1.msra.mxu0 0.0
    %93 = vmatprep.subr.mxu0 0.0
    %94 = vmatpush1.msra.mxu0 0.0
    %95 = vmatprep.mubr.f32.mxu0 0.0
    %96 = vmatmul.mubr.f32.gmra.mrb[0].mxu0 %v29
    %v97 = vpop.f32.mrb[0].mxu0
    %v98 = vadd.f32 %v25, %v97
    %v99 = vpop.f32.mrb[0].mxu0
    %100 = vdwg.mxu0
    %vm101 = vcmask 80896
    %v102 = vsel %vm101, %v98, -inf
    %103 = vmax.xlane.f32.xlu0 %v102
    %v104 = vpop.xlane.xlu0 %103
    %v105 = vsub.f32 %v98, %v104
    %v106 = vmul.f32 %v105, 1.442695
    %v107 = vpow.pop %v106
    %v108 = vsel %vm101, %v107, 0.0
    %109 = vadd.xlane.f32.xlu0 %v108
    %v110 = vpop.xlane.xlu0 %109
    %v111 = vlog2.pop %v110
    %v112 = vmul.f32 %v111, 0.6931472
    %v113 = vsub.f32 %v105, %v112
    %114 = vst.msk [vmem:[#allocation2] sm:$0xff] %vm101, %v113
    // Predicated region
    $region14: #{tpu_custom_call.1} parent=1 // pred_check
      _
    $region15: #{tpu_custom_call.1} parent=1 // pred_check_branch
      %116 = sbr.rel (0) target = $region17
    $region16: #{tpu_custom_call.1} parent=1 // pred_region
      %s118 = ssub.s32 128, 128
      %119 = vsyncadd [#allocation3], %s118
      %s121 = sshll.u32 [#allocation2], 4
      %s122 = int_to_ptr.vmem [resolvable:$true] %s121
      %124 = dma.vmem_to_hbm [thread:$0]  %s122, 128, %s3, [#allocation3]
    $region17: #{tpu_custom_call.1} parent=1 // pred_fallthru
      _
    // Predicated region
    $region18: #{tpu_custom_call.1} parent=1 // pred_check
      _
    $region19: #{tpu_custom_call.1} parent=1 // pred_check_branch
      %126 = sbr.rel (0) target = $region21
    $region20: #{tpu_custom_call.1} parent=1 // pred_region
      %127 = dma.done [#allocation3], 128
    $region21: #{tpu_custom_call.1} parent=1 // pred_fallthru
      _
    %128 = vsyncpa [#allocation3], 1

</llo_original>
